<compile_context>
chip_gen: v6e
topology: v6e:2x2x1
jax: 0.10.0
libtpu: 0.0.40
codegen_flags: <defaults>
</compile_context>

<pallas_src>
import functools

import jax
import jax.numpy as jnp
from jax.experimental import pallas as pl
from jax.experimental.pallas import tpu as pltpu


def _clip_kernel(x_ref, o_ref, *, min_val, max_val):
    # Pure VPU work on the whole VMEM tile. max-then-min matches torch.clip
    # semantics (incl. min_val > max_val and NaN propagation).
    x = x_ref[...]
    lo = jnp.asarray(min_val, dtype=x.dtype)
    hi = jnp.asarray(max_val, dtype=x.dtype)
    o_ref[...] = jnp.minimum(jnp.maximum(x, lo), hi)


_LANE_CANDIDATES = (2048, 1024, 512, 256, 128)
_TARGET_BLOCK_BYTES = 4 * 1024 * 1024  # ~4 MiB per block (v6e/v5e roofline plateau)
_VMEM_LIMIT_BYTES = 32 * 1024 * 1024


def _round_up(x, m):
    return ((x + m - 1) // m) * m


def _block_rows_for(rows, lanes, itemsize, sub):
    """~4 MiB blocks with >=2 roughly even grid steps (megacore) when possible."""
    if rows <= 2 * sub:
        return rows  # tiny array: single full-dim block (always layout-legal)
    rows_per_block = max(sub, ((_TARGET_BLOCK_BYTES // (lanes * itemsize)) // sub) * sub)
    steps = max(2, pl.cdiv(rows, rows_per_block))
    if steps % 2:
        steps += 1  # even step count -> balanced split across v7x's 2 TensorCores
    block_rows = _round_up(pl.cdiv(rows, steps), sub)
    return min(block_rows, rows)


@functools.partial(jax.jit, static_argnames=("min_val", "max_val"))
def clip_pallas(img, min_val=0.0, max_val=1.0):
    """Elementwise clip matching torch.clip(img, min_val, max_val).

    img: any-rank array (e.g. NCHW). Returns same shape/dtype.
    """
    orig_shape = img.shape
    dtype = img.dtype
    n = img.size
    if n == 0:
        return img

    itemsize = jnp.dtype(dtype).itemsize
    # Sublane packing per dtype: f32 -> 8, bf16 -> 16, int8/fp8 -> 32.
    sub = max(8, 32 // itemsize)

    kernel = functools.partial(
        _clip_kernel, min_val=float(min_val), max_val=float(max_val))
    params = pltpu.CompilerParams(
        dimension_semantics=("parallel",),      # shard grid steps across v7x's 2 TCs
        vmem_limit_bytes=_VMEM_LIMIT_BYTES,
    )

    flat = img.reshape(-1)

    # Prefer a lane width that divides n exactly -> lane-dense 2-D slab, zero pad.
    lanes = next((c for c in _LANE_CANDIDATES if n % c == 0), None)

    if lanes is not None:
        rows = n // lanes
        block_rows = _block_rows_for(rows, lanes, itemsize, sub)
        grid = (pl.cdiv(rows, block_rows),)     # ragged last row-block is masked
        out = pl.pallas_call(
            kernel,
            out_shape=jax.ShapeDtypeStruct((rows, lanes), dtype),
            grid_spec=pltpu.PrefetchScalarGridSpec(
                num_scalar_prefetch=0,
                grid=grid,
                in_specs=[pl.BlockSpec((block_rows, lanes), lambda i: (i, 0))],
                out_specs=pl.BlockSpec((block_rows, lanes), lambda i: (i, 0)),
            ),
            compiler_params=params,
        )(flat.reshape(rows, lanes))
        return out.reshape(orig_shape)

    # Ragged n (n % 128 != 0): 1-D grid over the flat array. Pallas masks the
    # ragged last block in-kernel -- no host-side pad/concat/slice passes.
    quantum = sub * 128
    block_elems = max(quantum, ((_TARGET_BLOCK_BYTES // itemsize) // quantum) * quantum)
    if block_elems >= n:
        block_elems = n                          # full array dim -> always legal
        grid = (1,)
    else:
        steps = max(2, pl.cdiv(n, block_elems))
        if steps % 2:
            steps += 1
        block_elems = _round_up(pl.cdiv(n, steps), quantum)
        grid = (pl.cdiv(n, block_elems),)
    out = pl.pallas_call(
        kernel,
        out_shape=jax.ShapeDtypeStruct((n,), dtype),
        grid_spec=pltpu.PrefetchScalarGridSpec(
            num_scalar_prefetch=0,
            grid=grid,
            in_specs=[pl.BlockSpec((block_elems,), lambda i: (i,))],
            out_specs=pl.BlockSpec((block_elems,), lambda i: (i,)),
        ),
        compiler_params=params,
    )(flat)
    return out.reshape(orig_shape)


if __name__ == "__main__":
    key = jax.random.PRNGKey(0)
    k1, k2 = jax.random.split(key)

    # NCHW CIFAR-style input, values outside [0, 1] so the clip actually does something.
    x = jax.random.normal(k1, (2, 4, 16, 16), dtype=jnp.float32) * 2.0
    y = jax.block_until_ready(clip_pallas(x, min_val=0.0, max_val=1.0))
    assert y.shape == x.shape and y.dtype == x.dtype
    assert jnp.allclose(y, jnp.clip(x, 0.0, 1.0)), "mismatch vs reference clip (2-D path)"

    # Ragged element count (105, not a multiple of 128) exercises the 1-D path.
    xr = jax.random.normal(k2, (3, 5, 7), dtype=jnp.float32) * 2.0
    yr = jax.block_until_ready(clip_pallas(xr, min_val=-0.5, max_val=0.5))
    assert yr.shape == xr.shape and yr.dtype == xr.dtype
    assert jnp.allclose(yr, jnp.clip(xr, -0.5, 0.5)), "mismatch vs reference clip (1-D path)"

    print("KERNEL_OK")
</pallas_src>

<mosaic_0001>
module attributes {stable_mosaic.version = 11 : i64} {
  func.func @_clip_kernel(%arg0: i32, %arg1: memref<1x2048xf32, #tpu.memory_space<vmem>>, %arg2: memref<1x2048xf32, #tpu.memory_space<vmem>>) attributes {dimension_semantics = [#tpu.dimension_semantics<parallel>], iteration_bounds = array<i64: 1>, scalar_prefetch = 0 : i64, scratch_operands = 0 : i64, tpu.core_type = #tpu.core_type<tc>, window_params = [{transform_indices = @transform_0, window_bounds = array<i64: 1, 2048>}, {transform_indices = @transform_1, window_bounds = array<i64: 1, 2048>}]} {
    %c0 = arith.constant 0 : index
    %c0_0 = arith.constant 0 : index
    %0 = vector.load %arg1[%c0, %c0_0] : memref<1x2048xf32, #tpu.memory_space<vmem>>, vector<1x2048xf32>
    %cst = arith.constant 0.000000e+00 : f32
    %1 = vector.broadcast %cst : f32 to vector<1x2048xf32>
    %2 = arith.maximumf %0, %1 : vector<1x2048xf32>
    %cst_1 = arith.constant 1.000000e+00 : f32
    %3 = vector.broadcast %cst_1 : f32 to vector<1x2048xf32>
    %4 = arith.minimumf %2, %3 : vector<1x2048xf32>
    %c0_2 = arith.constant 0 : index
    %c0_3 = arith.constant 0 : index
    %5 = vector.load %arg2[%c0_2, %c0_3] : memref<1x2048xf32, #tpu.memory_space<vmem>>, vector<1x2048xf32>
    tpu.vector_store %arg2[%c0_2, %c0_3], %4 {strides = array<i32>} : memref<1x2048xf32, #tpu.memory_space<vmem>>, vector<1x2048xf32>,
    return
  }
  func.func @transform_0(%arg0: i32) -> (i32, i32) {
    %c0_i32 = arith.constant 0 : i32
    %c0_i32_0 = arith.constant 0 : i32
    return %arg0, %c0_i32 : i32, i32
  }
  func.func @transform_1(%arg0: i32) -> (i32, i32) {
    %c0_i32 = arith.constant 0 : i32
    %c0_i32_0 = arith.constant 0 : i32
    return %arg0, %c0_i32 : i32, i32
  }
}

</mosaic_0001>

<llo_original>
// kernel: clip_pallas.1
$region0: #{clip_pallas.1}
  #allocation0 [shape = 'u32[]', space=smem, size = 0x4, offset = 0x4, fixed_abs, tag = 'smem constant byte address 0x4 - core index']
  #allocation1 [shape = 'u32[144,128]{1,0:T(1,128)}', space=vmem, size = 0x12000, scoped, tag = 'internal scratch']
  %s0 = inlined_call_operand.vmem [shape: f32[1,2048], index: 0, kind: input, shape index: {}]
  %s1 = inlined_call_operand.vmem [shape: f32[1,2048], index: 1, kind: output, shape index: {}]
  %s2 = sld [smem:[#allocation0]]
  $region14: #{clip_pallas.1} parent=0
    _
  %s4 = ssub.s32 1, %s2
  %s5 = scalar_select 0, %s4, %s2
  // Predicated region
  $region2: #{clip_pallas.1} parent=0 // pred_check
    _
  $region3: #{clip_pallas.1} parent=0 // pred_check_branch
    %7 = sbr.rel (0) target = $region5
  $region4: #{clip_pallas.1} parent=0 // pred_region
    _
  $region5: #{clip_pallas.1} parent=0 // pred_fallthru
    _
  %v8 = vld [vmem:[%s0] sm:$0xff]
  %v9 = vld [vmem:[%s0 + $0x8] sm:$0xff]
  %v10 = vmax.f32 %v8, 0.0
  %v11 = vmax.f32 %v9, 0.0
  %v12 = vmin.f32 %v10, 1.0
  %v13 = vmin.f32 %v11, 1.0
  %14 = vst [vmem:[%s1] sm:$0xff] %v12
  %15 = vst [vmem:[%s1 + $0x8] sm:$0xff] %v13
  // Predicated region
  $region6: #{clip_pallas.1} parent=0 // pred_check
    _
  $region7: #{clip_pallas.1} parent=0 // pred_check_branch
    %17 = sbr.rel (0) target = $region9
  $region8: #{clip_pallas.1} parent=0 // pred_region
    _
  $region9: #{clip_pallas.1} parent=0 // pred_fallthru
    _
  // Predicated region
  $region10: #{clip_pallas.1} parent=0 // pred_check
    _
  $region11: #{clip_pallas.1} parent=0 // pred_check_branch
    %19 = sbr.rel (0) target = $region13
  $region12: #{clip_pallas.1} parent=0 // pred_region
    _
  $region13: #{clip_pallas.1} parent=0 // pred_fallthru
    _

</llo_original>
